<compile_context>
chip_gen: v5e
topology: v5e:2x2
jax: 0.10.0
libtpu: 0.0.40
codegen_flags: <defaults>
</compile_context>

<pallas_src>
import jax
import jax.numpy as jnp
import numpy as np
from jax.experimental import pallas as pl
from jax.experimental.pallas import tpu as pltpu

# --- module hyper-parameters (from TruncatedRNN.__init__) ---
N_CTX = 2
N_STATES = 16
STATE_DIM = 32
HIDDEN_DIM = 128
OUTPUT_DIM = 2
T = 3                      # [ctx, f1, f2] (ctx_order='first')
CTX_ORDER = "first"
CTX_SCALE = 1.0

MAX_TILE_B = 1024          # big tiles amortize per-grid-step overhead
MIN_SPLIT_TILE_B = 512     # don't shrink tiles below this just to add tiles
SMALL_BATCH_XLA = 64       # below this, plain-JAX recurrence is faster
VMEM_LIMIT_BYTES = 48 * 1024 * 1024


def _ceil_div(a, b):
    return -(-a // b)


def _round_up(a, b):
    return _ceil_div(a, b) * b


def _device_info():
    """Returns (bf16_gates, num_tensorcores) from the local TPU generation."""
    try:
        dev = jax.devices()[0]
        kind = dev.device_kind.lower()
        is_tpu = dev.platform == "tpu"
    except Exception:
        kind, is_tpu = "", False
    is_v5 = "v5" in kind
    is_v7 = ("v7" in kind) or ("7x" in kind) or ("tpu7" in kind)
    bf16_gates = is_tpu and not is_v5     # v5e has no bf16 VPU/EUP
    num_cores = 2 if is_v7 else 1         # v7x: 2 TensorCores per chip
    return bf16_gates, num_cores


def _choose_tiling(batch, num_cores):
    """Adaptive tile size: few, large tiles; even tile count on v7x."""
    n_tiles = _ceil_div(batch, MAX_TILE_B)
    if num_cores > 1:
        n_even = _round_up(n_tiles, num_cores)
        if _ceil_div(batch, n_even) >= MIN_SPLIT_TILE_B:
            n_tiles = n_even
    tile_b = max(8, _round_up(_ceil_div(batch, n_tiles), 8))
    return tile_b, tile_b * n_tiles, n_tiles


def make_lstm_kernel(bf16_gates):
    gate_dt = jnp.bfloat16 if bf16_gates else jnp.float32

    def lstm_kernel(x_ref, wih_ref, whh_ref, b_ref, out_ref):
        """Unrolled 3-step LSTMCell over one batch tile; h/c live in vregs."""
        H = HIDDEN_DIM
        B = x_ref.shape[1]

        # Hoisted input projection: all T steps in one MXU matmul (bf16
        # operands, f32 accumulation); bias added once in f32.
        x_all = x_ref[...].reshape(T * B, STATE_DIM)
        gates_all = (jnp.dot(x_all, wih_ref[...],
                             preferred_element_type=jnp.float32)
                     + b_ref[...])                        # (T*B, 4H) f32

        whh = whh_ref[...]                                # bf16 (128, 512)
        half = jnp.asarray(0.5, gate_dt)

        def sig(v):                                       # one EUP op each
            return half * jnp.tanh(half * v) + half

        h_bf = None
        c = None
        for t in range(T):                                # static unroll, T=3
            gates = gates_all[t * B:(t + 1) * B]
            if t > 0:                                     # h == 0 at t == 0
                gates = gates + jnp.dot(h_bf, whh,
                                        preferred_element_type=jnp.float32)
            g = gates.astype(gate_dt)                     # bf16 gates (v6e/v7x)
            i_g = sig(g[:, 0:H])
            f_g = sig(g[:, H:2 * H])
            g_g = jnp.tanh(g[:, 2 * H:3 * H])
            o_g = sig(g[:, 3 * H:4 * H])
            ig = i_g.astype(jnp.float32) * g_g.astype(jnp.float32)
            c = ig if t == 0 else f_g.astype(jnp.float32) * c + ig   # c in f32
            h = o_g.astype(jnp.float32) * jnp.tanh(c)                # h in f32
            h_bf = h.astype(jnp.bfloat16)
            out_ref[t] = h_bf                             # (tile_b,128) bf16 vst

    return lstm_kernel


def run_rnn_kernel(x, w_ih_t_bf, w_hh_t_bf, b_gates):
    """x: (T, B, STATE_DIM) f32 -> lstm_out: (T, B, HIDDEN_DIM) bf16."""
    bf16_gates, num_cores = _device_info()
    T_, B, D = x.shape
    tile_b, b_pad, n_tiles = _choose_tiling(B, num_cores)
    if b_pad != B:
        x = jnp.pad(x, ((0, 0), (0, b_pad - B), (0, 0)))
    x = x.astype(jnp.bfloat16)                            # cast once, halves DMA

    lstm_out = pl.pallas_call(
        make_lstm_kernel(bf16_gates),
        out_shape=jax.ShapeDtypeStruct((T_, b_pad, HIDDEN_DIM), jnp.bfloat16),
        grid=(n_tiles,),
        in_specs=[
            pl.BlockSpec((T_, tile_b, D), lambda i: (0, i, 0)),
            pl.BlockSpec((D, 4 * HIDDEN_DIM), lambda i: (0, 0)),
            pl.BlockSpec((HIDDEN_DIM, 4 * HIDDEN_DIM), lambda i: (0, 0)),
            pl.BlockSpec((1, 4 * HIDDEN_DIM), lambda i: (0, 0)),
        ],
        out_specs=pl.BlockSpec((T_, tile_b, HIDDEN_DIM), lambda i: (0, i, 0)),
        compiler_params=pltpu.CompilerParams(
            dimension_semantics=("parallel",),
            vmem_limit_bytes=VMEM_LIMIT_BYTES),
    )(x, w_ih_t_bf, w_hh_t_bf, b_gates)
    return lstm_out[:, :B, :]


def lstm_forward_xla(x, w_ih_t, w_hh_t, b_gates):
    """Plain-JAX fallback for tiny batches (launch overhead dominates)."""
    B = x.shape[1]
    H = HIDDEN_DIM
    h = jnp.zeros((B, H), jnp.float32)
    c = jnp.zeros((B, H), jnp.float32)
    outs = []
    for t in range(T):
        gates = x[t] @ w_ih_t + h @ w_hh_t + b_gates
        i = jax.nn.sigmoid(gates[:, 0:H])
        f = jax.nn.sigmoid(gates[:, H:2 * H])
        g = jnp.tanh(gates[:, 2 * H:3 * H])
        o = jax.nn.sigmoid(gates[:, 3 * H:4 * H])
        c = f * c + i * g
        h = o * jnp.tanh(c)
        outs.append(h)
    return jnp.stack(outs, axis=0)


def init_params(key):
    ks = jax.random.split(key, 7)
    # Embeddings: xavier_normal_ -> std = sqrt(2 / (fan_in + fan_out))
    ctx_w = jax.random.normal(ks[0], (N_CTX, STATE_DIM), jnp.float32) * \
        np.sqrt(2.0 / (N_CTX + STATE_DIM))
    ctx_bias = jnp.concatenate([jnp.ones((1, STATE_DIM), jnp.float32),
                                -jnp.ones((1, STATE_DIM), jnp.float32)], axis=0)
    ctx_w = ctx_w + ctx_bias
    face_w = jax.random.normal(ks[1], (N_STATES, STATE_DIM), jnp.float32) * \
        np.sqrt(2.0 / (N_STATES + STATE_DIM))
    # LSTMCell: uniform(-k, k), k = 1/sqrt(hidden)
    k = 1.0 / np.sqrt(HIDDEN_DIM)
    w_ih = jax.random.uniform(ks[2], (4 * HIDDEN_DIM, STATE_DIM),
                              jnp.float32, -k, k)
    w_hh = jax.random.uniform(ks[3], (4 * HIDDEN_DIM, HIDDEN_DIM),
                              jnp.float32, -k, k)
    b_ih = jax.random.uniform(ks[4], (4 * HIDDEN_DIM,), jnp.float32, -k, k)
    b_hh = jax.random.uniform(ks[5], (4 * HIDDEN_DIM,), jnp.float32, -k, k)
    # Output linear: uniform(-ko, ko), ko = 1/sqrt(hidden)
    ko = 1.0 / np.sqrt(HIDDEN_DIM)
    w_out = jax.random.uniform(ks[6], (OUTPUT_DIM, HIDDEN_DIM),
                               jnp.float32, -ko, ko)
    b_out = jnp.zeros((OUTPUT_DIM,), jnp.float32)
    return dict(ctx_w=ctx_w, face_w=face_w, w_ih=w_ih, w_hh=w_hh,
                b_ih=b_ih, b_hh=b_hh, w_out=w_out, b_out=b_out)


def truncated_rnn_forward(params, ctx, f1, f2, use_pallas=None):
    """Mirrors TruncatedRNN.forward (ctx_order='first', use_images=False)."""
    ctx_embed = jnp.take(params["ctx_w"], ctx, axis=0) * CTX_SCALE   # (B, D)
    f1_embed = jnp.take(params["face_w"], f1, axis=0)                # (B, D)
    f2_embed = jnp.take(params["face_w"], f2, axis=0)                # (B, D)
    if CTX_ORDER == "last":
        x = jnp.stack([f1_embed, f2_embed, ctx_embed], axis=0)
        f1_ind, f2_ind = 0, 1
    else:  # 'first'
        x = jnp.stack([ctx_embed, f1_embed, f2_embed], axis=0)
        f1_ind, f2_ind = 1, 2

    # Pre-transpose weights for (B, in) @ (in, 4H) matmuls.
    w_ih_t = params["w_ih"].T                                   # (32, 512)
    w_hh_t = params["w_hh"].T                                   # (128, 512)
    b_gates = (params["b_ih"] + params["b_hh"]).reshape(1, -1)  # (1, 512) f32

    B = ctx.shape[0]
    if use_pallas is None:
        use_pallas = B >= SMALL_BATCH_XLA
    if use_pallas:
        lstm_out = run_rnn_kernel(x,
                                  w_ih_t.astype(jnp.bfloat16),
                                  w_hh_t.astype(jnp.bfloat16),
                                  b_gates).astype(jnp.float32)  # (T, B, 128)
    else:
        lstm_out = lstm_forward_xla(x, w_ih_t, w_hh_t, b_gates)

    # Tiny (B,128)@(128,2) head stays in the wrapper: a 2-lane output inside
    # the kernel would force masked partial stores and an extra MXU drain.
    logits = lstm_out[-1] @ params["w_out"].T + params["b_out"].reshape(1, -1)
    reps = {"hidden_f1": lstm_out[f1_ind], "hidden_f2": lstm_out[f2_ind]}
    return logits, reps


def reference_forward(params, ctx, f1, f2):
    """Pure-JAX f32 reference replicating torch.nn.LSTMCell semantics."""
    ctx_embed = jnp.take(params["ctx_w"], ctx, axis=0) * CTX_SCALE
    f1_embed = jnp.take(params["face_w"], f1, axis=0)
    f2_embed = jnp.take(params["face_w"], f2, axis=0)
    x = jnp.stack([ctx_embed, f1_embed, f2_embed], axis=0)
    B = ctx.shape[0]
    H = HIDDEN_DIM
    h = jnp.zeros((B, H), jnp.float32)
    c = jnp.zeros((B, H), jnp.float32)
    outs = []
    for t in range(T):
        gates = x[t] @ params["w_ih"].T + params["b_ih"] + \
            h @ params["w_hh"].T + params["b_hh"]
        i = jax.nn.sigmoid(gates[:, 0:H])
        f = jax.nn.sigmoid(gates[:, H:2 * H])
        g = jnp.tanh(gates[:, 2 * H:3 * H])
        o = jax.nn.sigmoid(gates[:, 3 * H:4 * H])
        c = f * c + i * g
        h = o * jnp.tanh(c)
        outs.append(h)
    logits = h @ params["w_out"].T + params["b_out"]
    return logits, {"hidden_f1": outs[1], "hidden_f2": outs[2]}


if __name__ == "__main__":
    key = jax.random.PRNGKey(0)
    pkey, ikey = jax.random.split(key)
    params = init_params(pkey)

    B = 4
    k1, k2, k3 = jax.random.split(ikey, 3)
    ctx = jax.random.randint(k1, (B,), 0, N_CTX, dtype=jnp.int32)
    f1 = jax.random.randint(k2, (B,), 0, N_STATES, dtype=jnp.int32)
    f2 = jax.random.randint(k3, (B,), 0, N_STATES, dtype=jnp.int32)

    # Force the Pallas path (the auto-dispatcher would pick plain JAX at B=4).
    logits, reps = truncated_rnn_forward(params, ctx, f1, f2, use_pallas=True)
    jax.block_until_ready(logits)
    jax.block_until_ready(reps["hidden_f1"])
    jax.block_until_ready(reps["hidden_f2"])

    ref_logits, ref_reps = reference_forward(params, ctx, f1, f2)
    # Tolerance loosened vs. the pure-f32 reference: bf16 matmul operands,
    # bf16 gate nonlinearities (v6e/v7x) and a bf16 output store; cell state
    # and updates stay f32. Observed error is ~1e-3..1e-2.
    np.testing.assert_allclose(np.asarray(logits), np.asarray(ref_logits),
                               rtol=3e-2, atol=3e-2)
    np.testing.assert_allclose(np.asarray(reps["hidden_f1"]),
                               np.asarray(ref_reps["hidden_f1"]),
                               rtol=3e-2, atol=3e-2)
    np.testing.assert_allclose(np.asarray(reps["hidden_f2"]),
                               np.asarray(ref_reps["hidden_f2"]),
                               rtol=3e-2, atol=3e-2)
    print("KERNEL_OK")
</pallas_src>

<mosaic_0001>
module attributes {stable_mosaic.version = 11 : i64} {
  func.func @lstm_kernel(%arg0: i32, %arg1: memref<3x8x32xbf16, #tpu.memory_space<vmem>>, %arg2: memref<32x512xbf16, #tpu.memory_space<vmem>>, %arg3: memref<128x512xbf16, #tpu.memory_space<vmem>>, %arg4: memref<1x512xf32, #tpu.memory_space<vmem>>, %arg5: memref<3x8x128xbf16, #tpu.memory_space<vmem>>) attributes {dimension_semantics = [#tpu.dimension_semantics<parallel>], iteration_bounds = array<i64: 1>, scalar_prefetch = 0 : i64, scratch_operands = 0 : i64, tpu.core_type = #tpu.core_type<tc>, window_params = [{transform_indices = @transform_0, window_bounds = array<i64: 3, 8, 32>}, {pipeline_mode = #tpu.pipeline_mode<synchronous>, transform_indices = @transform_1, window_bounds = array<i64: 32, 512>}, {pipeline_mode = #tpu.pipeline_mode<synchronous>, transform_indices = @transform_2, window_bounds = array<i64: 128, 512>}, {pipeline_mode = #tpu.pipeline_mode<synchronous>, transform_indices = @transform_3, window_bounds = array<i64: 1, 512>}, {transform_indices = @transform_4, window_bounds = array<i64: 3, 8, 128>}]} {
    %c0 = arith.constant 0 : index
    %c0_0 = arith.constant 0 : index
    %c0_1 = arith.constant 0 : index
    %0 = vector.load %arg1[%c0, %c0_0, %c0_1] : memref<3x8x32xbf16, #tpu.memory_space<vmem>>, vector<3x8x32xbf16>
    %1 = vector.shape_cast %0 : vector<3x8x32xbf16> to vector<24x32xbf16>
    %c0_2 = arith.constant 0 : index
    %c0_3 = arith.constant 0 : index
    %2 = vector.load %arg2[%c0_2, %c0_3] : memref<32x512xbf16, #tpu.memory_space<vmem>>, vector<32x512xbf16>
    %cst = arith.constant dense<0.000000e+00> : vector<24x512xf32>
    %3 = tpu.matmul %1, %2, %cst {dimension_numbers = #tpu.dot_dimension_numbers<[1], [0], [0], [1], [0, 0, 1, 1], [], []>} : vector<24x32xbf16>, vector<32x512xbf16>, vector<24x512xf32> -> vector<24x512xf32>
    %c0_4 = arith.constant 0 : index
    %c0_5 = arith.constant 0 : index
    %4 = vector.load %arg4[%c0_4, %c0_5] : memref<1x512xf32, #tpu.memory_space<vmem>>, vector<1x512xf32>
    %5 = vector.broadcast %4 : vector<1x512xf32> to vector<24x512xf32>
    %6 = arith.addf %3, %5 : vector<24x512xf32>
    %c0_6 = arith.constant 0 : index
    %c0_7 = arith.constant 0 : index
    %7 = vector.load %arg3[%c0_6, %c0_7] : memref<128x512xbf16, #tpu.memory_space<vmem>>, vector<128x512xbf16>
    %8 = vector.extract_strided_slice %6 {offsets = [0, 0], sizes = [8, 512], strides = [1, 1]} : vector<24x512xf32> to vector<8x512xf32>
    %9 = vector.extract_strided_slice %8 {offsets = [0, 0], sizes = [8, 128], strides = [1, 1]} : vector<8x512xf32> to vector<8x128xf32>
    %cst_8 = arith.constant 5.000000e-01 : f32
    %10 = vector.broadcast %cst_8 : f32 to vector<8x128xf32>
    %11 = arith.mulf %10, %9 : vector<8x128xf32>
    %12 = math.tanh %11 : vector<8x128xf32>
    %cst_9 = arith.constant 5.000000e-01 : f32
    %13 = vector.broadcast %cst_9 : f32 to vector<8x128xf32>
    %14 = arith.mulf %13, %12 : vector<8x128xf32>
    %cst_10 = arith.constant 5.000000e-01 : f32
    %15 = vector.broadcast %cst_10 : f32 to vector<8x128xf32>
    %16 = arith.addf %14, %15 : vector<8x128xf32>
    %17 = vector.extract_strided_slice %8 {offsets = [0, 256], sizes = [8, 128], strides = [1, 1]} : vector<8x512xf32> to vector<8x128xf32>
    %18 = math.tanh %17 : vector<8x128xf32>
    %19 = vector.extract_strided_slice %8 {offsets = [0, 384], sizes = [8, 128], strides = [1, 1]} : vector<8x512xf32> to vector<8x128xf32>
    %cst_11 = arith.constant 5.000000e-01 : f32
    %20 = vector.broadcast %cst_11 : f32 to vector<8x128xf32>
    %21 = arith.mulf %20, %19 : vector<8x128xf32>
    %22 = math.tanh %21 : vector<8x128xf32>
    %cst_12 = arith.constant 5.000000e-01 : f32
    %23 = vector.broadcast %cst_12 : f32 to vector<8x128xf32>
    %24 = arith.mulf %23, %22 : vector<8x128xf32>
    %cst_13 = arith.constant 5.000000e-01 : f32
    %25 = vector.broadcast %cst_13 : f32 to vector<8x128xf32>
    %26 = arith.addf %24, %25 : vector<8x128xf32>
    %27 = arith.mulf %16, %18 : vector<8x128xf32>
    %28 = math.tanh %27 : vector<8x128xf32>
    %29 = arith.mulf %26, %28 : vector<8x128xf32>
    %30 = arith.truncf %29 : vector<8x128xf32> to vector<8x128xbf16>
    %c0_14 = arith.constant 0 : index
    %c0_15 = arith.constant 0 : index
    %c0_16 = arith.constant 0 : index
    %31 = vector.load %arg5[%c0_14, %c0_15, %c0_16] : memref<3x8x128xbf16, #tpu.memory_space<vmem>>, vector<1x8x128xbf16>
    %32 = vector.shape_cast %31 : vector<1x8x128xbf16> to vector<8x128xbf16>
    %33 = vector.shape_cast %30 : vector<8x128xbf16> to vector<1x8x128xbf16>
    tpu.vector_store %arg5[%c0_14, %c0_15, %c0_16], %33 {strides = array<i32>} : memref<3x8x128xbf16, #tpu.memory_space<vmem>>, vector<1x8x128xbf16>,
    %34 = vector.extract_strided_slice %6 {offsets = [8, 0], sizes = [8, 512], strides = [1, 1]} : vector<24x512xf32> to vector<8x512xf32>
    %cst_17 = arith.constant dense<0.000000e+00> : vector<8x512xf32>
    %35 = tpu.matmul %30, %7, %cst_17 {dimension_numbers = #tpu.dot_dimension_numbers<[1], [0], [0], [1], [0, 0, 1, 1], [], []>} : vector<8x128xbf16>, vector<128x512xbf16>, vector<8x512xf32> -> vector<8x512xf32>
    %36 = arith.addf %34, %35 : vector<8x512xf32>
    %37 = vector.extract_strided_slice %36 {offsets = [0, 0], sizes = [8, 128], strides = [1, 1]} : vector<8x512xf32> to vector<8x128xf32>
    %cst_18 = arith.constant 5.000000e-01 : f32
    %38 = vector.broadcast %cst_18 : f32 to vector<8x128xf32>
    %39 = arith.mulf %38, %37 : vector<8x128xf32>
    %40 = math.tanh %39 : vector<8x128xf32>
    %cst_19 = arith.constant 5.000000e-01 : f32
    %41 = vector.broadcast %cst_19 : f32 to vector<8x128xf32>
    %42 = arith.mulf %41, %40 : vector<8x128xf32>
    %cst_20 = arith.constant 5.000000e-01 : f32
    %43 = vector.broadcast %cst_20 : f32 to vector<8x128xf32>
    %44 = arith.addf %42, %43 : vector<8x128xf32>
    %45 = vector.extract_strided_slice %36 {offsets = [0, 128], sizes = [8, 128], strides = [1, 1]} : vector<8x512xf32> to vector<8x128xf32>
    %cst_21 = arith.constant 5.000000e-01 : f32
    %46 = vector.broadcast %cst_21 : f32 to vector<8x128xf32>
    %47 = arith.mulf %46, %45 : vector<8x128xf32>
    %48 = math.tanh %47 : vector<8x128xf32>
    %cst_22 = arith.constant 5.000000e-01 : f32
    %49 = vector.broadcast %cst_22 : f32 to vector<8x128xf32>
    %50 = arith.mulf %49, %48 : vector<8x128xf32>
    %cst_23 = arith.constant 5.000000e-01 : f32
    %51 = vector.broadcast %cst_23 : f32 to vector<8x128xf32>
    %52 = arith.addf %50, %51 : vector<8x128xf32>
    %53 = vector.extract_strided_slice %36 {offsets = [0, 256], sizes = [8, 128], strides = [1, 1]} : vector<8x512xf32> to vector<8x128xf32>
    %54 = math.tanh %53 : vector<8x128xf32>
    %55 = vector.extract_strided_slice %36 {offsets = [0, 384], sizes = [8, 128], strides = [1, 1]} : vector<8x512xf32> to vector<8x128xf32>
    %cst_24 = arith.constant 5.000000e-01 : f32
    %56 = vector.broadcast %cst_24 : f32 to vector<8x128xf32>
    %57 = arith.mulf %56, %55 : vector<8x128xf32>
    %58 = math.tanh %57 : vector<8x128xf32>
    %cst_25 = arith.constant 5.000000e-01 : f32
    %59 = vector.broadcast %cst_25 : f32 to vector<8x128xf32>
    %60 = arith.mulf %59, %58 : vector<8x128xf32>
    %cst_26 = arith.constant 5.000000e-01 : f32
    %61 = vector.broadcast %cst_26 : f32 to vector<8x128xf32>
    %62 = arith.addf %60, %61 : vector<8x128xf32>
    %63 = arith.mulf %44, %54 : vector<8x128xf32>
    %64 = arith.mulf %52, %27 : vector<8x128xf32>
    %65 = arith.addf %64, %63 : vector<8x128xf32>
    %66 = math.tanh %65 : vector<8x128xf32>
    %67 = arith.mulf %62, %66 : vector<8x128xf32>
    %68 = arith.truncf %67 : vector<8x128xf32> to vector<8x128xbf16>
    %c1 = arith.constant 1 : index
    %c0_27 = arith.constant 0 : index
    %c0_28 = arith.constant 0 : index
    %69 = vector.load %arg5[%c1, %c0_27, %c0_28] : memref<3x8x128xbf16, #tpu.memory_space<vmem>>, vector<1x8x128xbf16>
    %70 = vector.shape_cast %69 : vector<1x8x128xbf16> to vector<8x128xbf16>
    %71 = vector.shape_cast %68 : vector<8x128xbf16> to vector<1x8x128xbf16>
    tpu.vector_store %arg5[%c1, %c0_27, %c0_28], %71 {strides = array<i32>} : memref<3x8x128xbf16, #tpu.memory_space<vmem>>, vector<1x8x128xbf16>,
    %72 = vector.extract_strided_slice %6 {offsets = [16, 0], sizes = [8, 512], strides = [1, 1]} : vector<24x512xf32> to vector<8x512xf32>
    %cst_29 = arith.constant dense<0.000000e+00> : vector<8x512xf32>
    %73 = tpu.matmul %68, %7, %cst_29 {dimension_numbers = #tpu.dot_dimension_numbers<[1], [0], [0], [1], [0, 0, 1, 1], [], []>} : vector<8x128xbf16>, vector<128x512xbf16>, vector<8x512xf32> -> vector<8x512xf32>
    %74 = arith.addf %72, %73 : vector<8x512xf32>
    %75 = vector.extract_strided_slice %74 {offsets = [0, 0], sizes = [8, 128], strides = [1, 1]} : vector<8x512xf32> to vector<8x128xf32>
    %cst_30 = arith.constant 5.000000e-01 : f32
    %76 = vector.broadcast %cst_30 : f32 to vector<8x128xf32>
    %77 = arith.mulf %76, %75 : vector<8x128xf32>
    %78 = math.tanh %77 : vector<8x128xf32>
    %cst_31 = arith.constant 5.000000e-01 : f32
    %79 = vector.broadcast %cst_31 : f32 to vector<8x128xf32>
    %80 = arith.mulf %79, %78 : vector<8x128xf32>
    %cst_32 = arith.constant 5.000000e-01 : f32
    %81 = vector.broadcast %cst_32 : f32 to vector<8x128xf32>
    %82 = arith.addf %80, %81 : vector<8x128xf32>
    %83 = vector.extract_strided_slice %74 {offsets = [0, 128], sizes = [8, 128], strides = [1, 1]} : vector<8x512xf32> to vector<8x128xf32>
    %cst_33 = arith.constant 5.000000e-01 : f32
    %84 = vector.broadcast %cst_33 : f32 to vector<8x128xf32>
    %85 = arith.mulf %84, %83 : vector<8x128xf32>
    %86 = math.tanh %85 : vector<8x128xf32>
    %cst_34 = arith.constant 5.000000e-01 : f32
    %87 = vector.broadcast %cst_34 : f32 to vector<8x128xf32>
    %88 = arith.mulf %87, %86 : vector<8x128xf32>
    %cst_35 = arith.constant 5.000000e-01 : f32
    %89 = vector.broadcast %cst_35 : f32 to vector<8x128xf32>
    %90 = arith.addf %88, %89 : vector<8x128xf32>
    %91 = vector.extract_strided_slice %74 {offsets = [0, 256], sizes = [8, 128], strides = [1, 1]} : vector<8x512xf32> to vector<8x128xf32>
    %92 = math.tanh %91 : vector<8x128xf32>
    %93 = vector.extract_strided_slice %74 {offsets = [0, 384], sizes = [8, 128], strides = [1, 1]} : vector<8x512xf32> to vector<8x128xf32>
    %cst_36 = arith.constant 5.000000e-01 : f32
    %94 = vector.broadcast %cst_36 : f32 to vector<8x128xf32>
    %95 = arith.mulf %94, %93 : vector<8x128xf32>
    %96 = math.tanh %95 : vector<8x128xf32>
    %cst_37 = arith.constant 5.000000e-01 : f32
    %97 = vector.broadcast %cst_37 : f32 to vector<8x128xf32>
    %98 = arith.mulf %97, %96 : vector<8x128xf32>
    %cst_38 = arith.constant 5.000000e-01 : f32
    %99 = vector.broadcast %cst_38 : f32 to vector<8x128xf32>
    %100 = arith.addf %98, %99 : vector<8x128xf32>
    %101 = arith.mulf %82, %92 : vector<8x128xf32>
    %102 = arith.mulf %90, %65 : vector<8x128xf32>
    %103 = arith.addf %102, %101 : vector<8x128xf32>
    %104 = math.tanh %103 : vector<8x128xf32>
    %105 = arith.mulf %100, %104 : vector<8x128xf32>
    %106 = arith.truncf %105 : vector<8x128xf32> to vector<8x128xbf16>
    %c2 = arith.constant 2 : index
    %c0_39 = arith.constant 0 : index
    %c0_40 = arith.constant 0 : index
    %107 = vector.load %arg5[%c2, %c0_39, %c0_40] : memref<3x8x128xbf16, #tpu.memory_space<vmem>>, vector<1x8x128xbf16>
    %108 = vector.shape_cast %107 : vector<1x8x128xbf16> to vector<8x128xbf16>
    %109 = vector.shape_cast %106 : vector<8x128xbf16> to vector<1x8x128xbf16>
    tpu.vector_store %arg5[%c2, %c0_39, %c0_40], %109 {strides = array<i32>} : memref<3x8x128xbf16, #tpu.memory_space<vmem>>, vector<1x8x128xbf16>,
    return
  }
  func.func @transform_0(%arg0: i32) -> (i32, i32, i32) {
    %c0_i32 = arith.constant 0 : i32
    %c0_i32_0 = arith.constant 0 : i32
    %c0_i32_1 = arith.constant 0 : i32
    return %c0_i32, %arg0, %c0_i32_0 : i32, i32, i32
  }
  func.func @transform_1(%arg0: i32) -> (i32, i32) {
    %c0_i32 = arith.constant 0 : i32
    %c0_i32_0 = arith.constant 0 : i32
    %c0_i32_1 = arith.constant 0 : i32
    return %c0_i32, %c0_i32_0 : i32, i32
  }
  func.func @transform_2(%arg0: i32) -> (i32, i32) {
    %c0_i32 = arith.constant 0 : i32
    %c0_i32_0 = arith.constant 0 : i32
    %c0_i32_1 = arith.constant 0 : i32
    return %c0_i32, %c0_i32_0 : i32, i32
  }
  func.func @transform_3(%arg0: i32) -> (i32, i32) {
    %c0_i32 = arith.constant 0 : i32
    %c0_i32_0 = arith.constant 0 : i32
    %c0_i32_1 = arith.constant 0 : i32
    return %c0_i32, %c0_i32_0 : i32, i32
  }
  func.func @transform_4(%arg0: i32) -> (i32, i32, i32) {
    %c0_i32 = arith.constant 0 : i32
    %c0_i32_0 = arith.constant 0 : i32
    %c0_i32_1 = arith.constant 0 : i32
    return %c0_i32, %arg0, %c0_i32_0 : i32, i32, i32
  }
}

</mosaic_0001>

<llo_original>
// kernel: tpu_custom_call.1
$region0: #{tpu_custom_call.1}
  #allocation0 [shape = 'u32[]', space=smem, size = 0x4, offset = 0x4, fixed_abs, tag = 'smem constant byte address 0x4 - core index']
  #allocation1 [shape = 'u32[72,128]{1,0:T(1,128)}', space=vmem, size = 0x9000, scoped, tag = 'internal scratch']
  %s0 = inlined_call_operand.hbm [shape: bf16[3,8,32], index: 0, kind: input, shape index: {}]
  %s1 = inlined_call_operand.hbm [shape: bf16[32,512], index: 1, kind: input, shape index: {}]
  %s2 = inlined_call_operand.hbm [shape: bf16[128,512], index: 2, kind: input, shape index: {}]
  %s3 = inlined_call_operand.hbm [shape: f32[1,512], index: 3, kind: input, shape index: {}]
  %s4 = inlined_call_operand.hbm [shape: bf16[3,8,128], index: 4, kind: output, shape index: {}]
  %s5 = sld [smem:[#allocation0]]
  $region42: #{tpu_custom_call.1} parent=0
    _
  %s7 = ssub.s32 1, %s5
  %s8 = scalar_select 0, %s7, %s5
  $region1: #{tpu_custom_call.1} parent=0
    #allocation2 [shape = 'u8[6144]{0}', space=vmem, size = 0x1800, scoped, tag = 'input window, operand 0, single buffered']
    #allocation3 [shape = 's32[1]{0}', space=sflag, size = 0x4, scoped, tag = 'scoped memory for tpu_custom_call.1']
    #allocation4 [shape = 's32[1]{0}', space=sflag, size = 0x4, scoped, tag = 'scoped memory for tpu_custom_call.1']
    #allocation5 [shape = 'u8[32768]{0}', space=vmem, size = 0x8000, scoped, tag = 'input window, operand 1, single buffered']
    #allocation6 [shape = 's32[1]{0}', space=sflag, size = 0x4, scoped, tag = 'scoped memory for tpu_custom_call.1']
    #allocation7 [shape = 'u8[131072]{0}', space=vmem, size = 0x20000, scoped, tag = 'input window, operand 2, single buffered']
    #allocation8 [shape = 'u8[2048]{0}', space=vmem, size = 0x800, scoped, tag = 'input window, operand 3, single buffered']
    #allocation9 [shape = 's32[1]{0}', space=sflag, size = 0x4, scoped, tag = 'scoped memory for tpu_custom_call.1']
    #allocation10 [shape = 'u8[6144]{0}', space=vmem, size = 0x1800, scoped, tag = 'output window, operand 0, single buffered']
    %9 = vsyncpa [#allocation3], 0
    %10 = vsyncpa [#allocation6], 0
    %11 = vsyncpa [#allocation9], 0
    %12 = vsyncpa [#allocation4], 0
    // Predicated region
    $region2: #{tpu_custom_call.1} parent=1 // pred_check
      _
    $region3: #{tpu_custom_call.1} parent=1 // pred_check_branch
      %14 = sbr.rel (0) target = $region5
    $region4: #{tpu_custom_call.1} parent=1 // pred_region
      %16 = vsyncadd [#allocation3], 0
      %s17 = sshll.u32 %s0, 4
      %s18 = int_to_ptr.hbm [resolvable:$true] %s17
      %s19 = sshll.u32 [#allocation2], 4
      %s20 = int_to_ptr.vmem [resolvable:$true] %s19
      %25 = dma.hbm_to_vmem [thread:$0]  %s18, 192, %s20, [#allocation3], 64, 64, 4
    $region5: #{tpu_custom_call.1} parent=1 // pred_fallthru
      _
    // Predicated region
    $region6: #{tpu_custom_call.1} parent=1 // pred_check
      _
    $region7: #{tpu_custom_call.1} parent=1 // pred_check_branch
      %27 = sbr.rel (0) target = $region9
    $region8: #{tpu_custom_call.1} parent=1 // pred_region
      %29 = vsyncadd [#allocation6], 0
      %s30 = sshll.u32 %s1, 4
      %s31 = int_to_ptr.hbm [resolvable:$true] %s30
      %s32 = sshll.u32 [#allocation5], 4
      %s33 = int_to_ptr.vmem [resolvable:$true] %s32
      %38 = dma.hbm_to_vmem [thread:$0]  %s31, 1024, %s33, [#allocation6], 256, 256, 16
    $region9: #{tpu_custom_call.1} parent=1 // pred_fallthru
      _
    // Predicated region
    $region10: #{tpu_custom_call.1} parent=1 // pred_check
      _
    $region11: #{tpu_custom_call.1} parent=1 // pred_check_branch
      %40 = sbr.rel (0) target = $region13
    $region12: #{tpu_custom_call.1} parent=1 // pred_region
      %42 = vsyncadd [#allocation6], 0
      %s43 = sshll.u32 %s2, 4
      %s44 = int_to_ptr.hbm [resolvable:$true] %s43
      %s45 = sshll.u32 [#allocation7], 4
      %s46 = int_to_ptr.vmem [resolvable:$true] %s45
      %51 = dma.hbm_to_vmem [thread:$0]  %s44, 4096, %s46, [#allocation6], 256, 256, 16
    $region13: #{tpu_custom_call.1} parent=1 // pred_fallthru
      _
    // Predicated region
    $region14: #{tpu_custom_call.1} parent=1 // pred_check
      _
    $region15: #{tpu_custom_call.1} parent=1 // pred_check_branch
      %53 = sbr.rel (0) target = $region17
    $region16: #{tpu_custom_call.1} parent=1 // pred_region
      %55 = vsyncadd [#allocation9], 0
      %s57 = sshll.u32 %s3, 4
      %s58 = int_to_ptr.hbm [resolvable:$true] %s57
      %s59 = sshll.u32 [#allocation8], 4
      %s60 = int_to_ptr.vmem [resolvable:$true] %s59
      %62 = dma.hbm_to_vmem [thread:$0]  %s58, 64, %s60, [#allocation9]
    $region17: #{tpu_custom_call.1} parent=1 // pred_fallthru
      _
    // Predicated region
    $region18: #{tpu_custom_call.1} parent=1 // pred_check
      _
    $region19: #{tpu_custom_call.1} parent=1 // pred_check_branch
      %64 = sbr.rel (0) target = $region21
    $region20: #{tpu_custom_call.1} parent=1 // pred_region
      %66 = dma.done [#allocation3], 192
    $region21: #{tpu_custom_call.1} parent=1 // pred_fallthru
      _
    // Predicated region
    $region22: #{tpu_custom_call.1} parent=1 // pred_check
      _
    $region23: #{tpu_custom_call.1} parent=1 // pred_check_branch
      %68 = sbr.rel (0) target = $region25
    $region24: #{tpu_custom_call.1} parent=1 // pred_region
      %70 = dma.done [#allocation6], 1024
    $region25: #{tpu_custom_call.1} parent=1 // pred_fallthru
      _
    // Predicated region
    $region26: #{tpu_custom_call.1} parent=1 // pred_check
      _
    $region27: #{tpu_custom_call.1} parent=1 // pred_check_branch
      %72 = sbr.rel (0) target = $region29
    $region28: #{tpu_custom_call.1} parent=1 // pred_region
      %74 = dma.done [#allocation6], 4096
    $region29: #{tpu_custom_call.1} parent=1 // pred_fallthru
      _
    // Predicated region
    $region30: #{tpu_custom_call.1} parent=1 // pred_check
      _
    $region31: #{tpu_custom_call.1} parent=1 // pred_check_branch
      %76 = sbr.rel (0) target = $region33
    $region32: #{tpu_custom_call.1} parent=1 // pred_region
      %78 = dma.done [#allocation9], 64
    $region33: #{tpu_custom_call.1} parent=1 // pred_fallthru
      _
    %v80 = vld [vmem:[#allocation2] sm:$0xf]
    %v81 = vld [vmem:[#allocation2 + $0x4] sm:$0xf]
    %v82 = vld [vmem:[#allocation2 + $0x8] sm:$0xf]
    %v83 = vld [vmem:[#allocation5] sm:$0xff]
    %v84 = vld [vmem:[#allocation5 + $0x8] sm:$0xff]
    %v85 = vld [vmem:[#allocation5 + $0x10] sm:$0xff]
    %v86 = vld [vmem:[#allocation5 + $0x18] sm:$0xff]
    %v87 = vld [vmem:[#allocation5 + $0x20] sm:$0xff]
    %v88 = vld [vmem:[#allocation5 + $0x28] sm:$0xff]
    %v89 = vld [vmem:[#allocation5 + $0x30] sm:$0xff]
    %v90 = vld [vmem:[#allocation5 + $0x38] sm:$0xff]
    %v91 = vld [vmem:[#allocation8] sm:$0xf]
    %v93 = vperm.slane %v91, 0
    %v94 = vperm.slane %v91, 1
    %v95 = vperm.slane %v91, 2
    %v96 = vperm.slane %v91, 3
    %v104 = vunpack.c.l.b16 %v80
    %v105 = vunpack.c.l.b16 %v81
    %v106 = vunpack.c.l.b16 %v82
    %v107 = vpack.c.b16 %v105, %v104
    %v108 = vpack.c.b16 %v106, %v106
    %v117 = vunpack.c.l.b16 %v83
    %v118 = vunpack.c.h.b16 %v83
    %v119 = vunpack.c.l.b16 %v84
    %v120 = vunpack.c.h.b16 %v84
    %v121 = vunpack.c.l.b16 %v85
    %v122 = vunpack.c.h.b16 %v85
    %v123 = vunpack.c.l.b16 %v86
    %v124 = vunpack.c.h.b16 %v86
    %v125 = vunpack.c.l.b16 %v87
    %v126 = vunpack.c.h.b16 %v87
    %v127 = vunpack.c.l.b16 %v88
    %v128 = vunpack.c.h.b16 %v88
    %v129 = vunpack.c.l.b16 %v89
    %v130 = vunpack.c.h.b16 %v89
    %v131 = vunpack.c.l.b16 %v90
    %v132 = vunpack.c.h.b16 %v90
    %v133 = vpack.c.b16 %v121, %v117
    %v134 = vpack.c.b16 %v122, %v118
    %v135 = vpack.c.b16 %v123, %v119
    %v136 = vpack.c.b16 %v124, %v120
    %v137 = vpack.c.b16 %v129, %v125
    %v138 = vpack.c.b16 %v130, %v126
    %v139 = vpack.c.b16 %v131, %v127
    %v140 = vpack.c.b16 %v132, %v128
    %vm149 = vcmask 261120
    %v151 = vsel %vm149, %v107, 0
    %v154 = vsel %vm149, %v108, 0
    %156 = vmatpush.bf16.msra.mxu0 0
    %157 = vmatpush.bf16.msra.mxu0 0
    %158 = vmatpush.bf16.msra.mxu0 0
    %159 = vmatpush.bf16.msra.mxu0 0
    %160 = vmatpush.bf16.msra.mxu0 0
    %161 = vmatpush.bf16.msra.mxu0 0
    %162 = vmatpush.bf16.msra.mxu0 %v137
    %163 = vmatpush.bf16.msra.mxu0 %v133
    %164 = vmatmul.bf16.gmra.mxu0 %v151
    %v165 = vpop.f32.mrf.mxu0
    %v166 = vadd.f32 %v93, %v165
    %v167 = vpop.f32.mrf.mxu0
    %v168 = vadd.f32 %v93, %v167
    %169 = vmatmul.bf16.gmra.mxu0 %v154
    %v170 = vpop.f32.mrf.mxu0
    %v171 = vadd.f32 %v93, %v170
    %v172 = vpop.f32.mrf.mxu0
    %173 = vdwg.mxu0
    %174 = vmatpush.bf16.msra.mxu0 0
    %175 = vmatpush.bf16.msra.mxu0 0
    %176 = vmatpush.bf16.msra.mxu0 0
    %177 = vmatpush.bf16.msra.mxu0 0
    %178 = vmatpush.bf16.msra.mxu0 0
    %179 = vmatpush.bf16.msra.mxu0 0
    %180 = vmatpush.bf16.msra.mxu0 %v138
    %181 = vmatpush.bf16.msra.mxu0 %v134
    %182 = vmatmul.bf16.gmra.mxu0 %v151
    %v183 = vpop.f32.mrf.mxu0
    %v184 = vpop.f32.mrf.mxu0
    %v185 = vadd.f32 %v94, %v184
    %186 = vmatmul.bf16.gmra.mxu0 %v154
    %v187 = vpop.f32.mrf.mxu0
    %v188 = vadd.f32 %v94, %v187
    %v189 = vpop.f32.mrf.mxu0
    %190 = vdwg.mxu0
    %191 = vmatpush.bf16.msra.mxu0 0
    %192 = vmatpush.bf16.msra.mxu0 0
    %193 = vmatpush.bf16.msra.mxu0 0
    %194 = vmatpush.bf16.msra.mxu0 0
    %195 = vmatpush.bf16.msra.mxu0 0
    %196 = vmatpush.bf16.msra.mxu0 0
    %197 = vmatpush.bf16.msra.mxu0 %v139
    %198 = vmatpush.bf16.msra.mxu0 %v135
    %199 = vmatmul.bf16.gmra.mxu0 %v151
    %v200 = vpop.f32.mrf.mxu0
    %v201 = vadd.f32 %v95, %v200
    %v202 = vpop.f32.mrf.mxu0
    %v203 = vadd.f32 %v95, %v202
    %204 = vmatmul.bf16.gmra.mxu0 %v154
    %v205 = vpop.f32.mrf.mxu0
    %v206 = vadd.f32 %v95, %v205
    %v207 = vpop.f32.mrf.mxu0
    %208 = vdwg.mxu0
    %209 = vmatpush.bf16.msra.mxu0 0
    %210 = vmatpush.bf16.msra.mxu0 0
    %211 = vmatpush.bf16.msra.mxu0 0
    %212 = vmatpush.bf16.msra.mxu0 0
    %213 = vmatpush.bf16.msra.mxu0 0
    %214 = vmatpush.bf16.msra.mxu0 0
    %215 = vmatpush.bf16.msra.mxu0 %v140
    %216 = vmatpush.bf16.msra.mxu0 %v136
    %217 = vmatmul.bf16.gmra.mxu0 %v151
    %v218 = vpop.f32.mrf.mxu0
    %v219 = vadd.f32 %v96, %v218
    %v220 = vpop.f32.mrf.mxu0
    %v221 = vadd.f32 %v96, %v220
    %222 = vmatmul.bf16.gmra.mxu0 %v154
    %v223 = vpop.f32.mrf.mxu0
    %v224 = vadd.f32 %v96, %v223
    %v225 = vpop.f32.mrf.mxu0
    %226 = vdwg.mxu0
    %v227 = vld [vmem:[#allocation7] sm:$0xff]
    %v228 = vld [vmem:[#allocation7 + $0x8] sm:$0xff]
    %v229 = vld [vmem:[#allocation7 + $0x10] sm:$0xff]
    %v230 = vld [vmem:[#allocation7 + $0x18] sm:$0xff]
    %v231 = vld [vmem:[#allocation7 + $0x20] sm:$0xff]
    %v232 = vld [vmem:[#allocation7 + $0x28] sm:$0xff]
    %v233 = vld [vmem:[#allocation7 + $0x30] sm:$0xff]
    %v234 = vld [vmem:[#allocation7 + $0x38] sm:$0xff]
    %v235 = vld [vmem:[#allocation7 + $0x40] sm:$0xff]
    %v236 = vld [vmem:[#allocation7 + $0x48] sm:$0xff]
    %v237 = vld [vmem:[#allocation7 + $0x50] sm:$0xff]
    %v238 = vld [vmem:[#allocation7 + $0x58] sm:$0xff]
    %v239 = vld [vmem:[#allocation7 + $0x60] sm:$0xff]
    %v240 = vld [vmem:[#allocation7 + $0x68] sm:$0xff]
    %v241 = vld [vmem:[#allocation7 + $0x70] sm:$0xff]
    %v242 = vld [vmem:[#allocation7 + $0x78] sm:$0xff]
    %v243 = vld [vmem:[#allocation7 + $0x80] sm:$0xff]
    %v244 = vld [vmem:[#allocation7 + $0x88] sm:$0xff]
    %v245 = vld [vmem:[#allocation7 + $0x90] sm:$0xff]
    %v246 = vld [vmem:[#allocation7 + $0x98] sm:$0xff]
    %v247 = vld [vmem:[#allocation7 + $0xa0] sm:$0xff]
    %v248 = vld [vmem:[#allocation7 + $0xa8] sm:$0xff]
    %v249 = vld [vmem:[#allocation7 + $0xb0] sm:$0xff]
    %v250 = vld [vmem:[#allocation7 + $0xb8] sm:$0xff]
    %v251 = vld [vmem:[#allocation7 + $0xc0] sm:$0xff]
    %v252 = vld [vmem:[#allocation7 + $0xc8] sm:$0xff]
    %v253 = vld [vmem:[#allocation7 + $0xd0] sm:$0xff]
    %v254 = vld [vmem:[#allocation7 + $0xd8] sm:$0xff]
    %v255 = vld [vmem:[#allocation7 + $0xe0] sm:$0xff]
    %v256 = vld [vmem:[#allocation7 + $0xe8] sm:$0xff]
    %v257 = vld [vmem:[#allocation7 + $0xf0] sm:$0xff]
    %v258 = vld [vmem:[#allocation7 + $0xf8] sm:$0xff]
    %v259 = vmul.f32 %v166, 0.5
    %v260 = vtanh.pop %v259
    %v261 = vmul.f32 %v260, 0.5
    %v262 = vadd.f32 %v261, 0.5
    %v263 = vtanh.pop %v201
    %v264 = vmul.f32 %v219, 0.5
    %v265 = vtanh.pop %v264
    %v266 = vmul.f32 %v265, 0.5
    %v267 = vadd.f32 %v266, 0.5
    %v268 = vmul.f32 %v262, %v263
    %v269 = vtanh.pop %v268
    %v270 = vmul.f32 %v267, %v269
    %v271 = vpack.c.bf16 %v270, %v270
    %272 = vst [vmem:[#allocation10] sm:$0xf] %v271
    %v305 = vunpack.c.l.b16 %v227
    %v306 = vunpack.c.h.b16 %v227
    %v307 = vunpack.c.l.b16 %v228
    %v308 = vunpack.c.h.b16 %v228
    %v309 = vunpack.c.l.b16 %v229
    %v310 = vunpack.c.h.b16 %v229
    %v311 = vunpack.c.l.b16 %v230
    %v312 = vunpack.c.h.b16 %v230
    %v313 = vunpack.c.l.b16 %v231
    %v314 = vunpack.c.h.b16 %v231
    %v315 = vunpack.c.l.b16 %v232
    %v316 = vunpack.c.h.b16 %v232
    %v317 = vunpack.c.l.b16 %v233
    %v318 = vunpack.c.h.b16 %v233
    %v319 = vunpack.c.l.b16 %v234
    %v320 = vunpack.c.h.b16 %v234
    %v321 = vunpack.c.l.b16 %v235
    %v322 = vunpack.c.h.b16 %v235
    %v323 = vunpack.c.l.b16 %v236
    %v324 = vunpack.c.h.b16 %v236
    %v325 = vunpack.c.l.b16 %v237
    %v326 = vunpack.c.h.b16 %v237
    %v327 = vunpack.c.l.b16 %v238
    %v328 = vunpack.c.h.b16 %v238
    %v329 = vunpack.c.l.b16 %v239
    %v330 = vunpack.c.h.b16 %v239
    %v331 = vunpack.c.l.b16 %v240
    %v332 = vunpack.c.h.b16 %v240
    %v333 = vunpack.c.l.b16 %v241
    %v334 = vunpack.c.h.b16 %v241
    %v335 = vunpack.c.l.b16 %v242
    %v336 = vunpack.c.h.b16 %v242
    %v337 = vunpack.c.l.b16 %v243
    %v338 = vunpack.c.h.b16 %v243
    %v339 = vunpack.c.l.b16 %v244
    %v340 = vunpack.c.h.b16 %v244
    %v341 = vunpack.c.l.b16 %v245
    %v342 = vunpack.c.h.b16 %v245
    %v343 = vunpack.c.l.b16 %v246
    %v344 = vunpack.c.h.b16 %v246
    %v345 = vunpack.c.l.b16 %v247
    %v346 = vunpack.c.h.b16 %v247
    %v347 = vunpack.c.l.b16 %v248
    %v348 = vunpack.c.h.b16 %v248
    %v349 = vunpack.c.l.b16 %v249
    %v350 = vunpack.c.h.b16 %v249
    %v351 = vunpack.c.l.b16 %v250
    %v352 = vunpack.c.h.b16 %v250
    %v353 = vunpack.c.l.b16 %v251
    %v354 = vunpack.c.h.b16 %v251
    %v355 = vunpack.c.l.b16 %v252
    %v356 = vunpack.c.h.b16 %v252
    %v357 = vunpack.c.l.b16 %v253
    %v358 = vunpack.c.h.b16 %v253
    %v359 = vunpack.c.l.b16 %v254
    %v360 = vunpack.c.h.b16 %v254
    %v361 = vunpack.c.l.b16 %v255
    %v362 = vunpack.c.h.b16 %v255
    %v363 = vunpack.c.l.b16 %v256
    %v364 = vunpack.c.h.b16 %v256
    %v365 = vunpack.c.l.b16 %v257
    %v366 = vunpack.c.h.b16 %v257
    %v367 = vunpack.c.l.b16 %v258
    %v368 = vunpack.c.h.b16 %v258
    %v369 = vpack.c.b16 %v309, %v305
    %v370 = vpack.c.b16 %v310, %v306
    %v371 = vpack.c.b16 %v311, %v307
    %v372 = vpack.c.b16 %v312, %v308
    %v373 = vpack.c.b16 %v317, %v313
    %v374 = vpack.c.b16 %v318, %v314
    %v375 = vpack.c.b16 %v319, %v315
    %v376 = vpack.c.b16 %v320, %v316
    %v377 = vpack.c.b16 %v325, %v321
    %v378 = vpack.c.b16 %v326, %v322
    %v379 = vpack.c.b16 %v327, %v323
    %v380 = vpack.c.b16 %v328, %v324
    %v381 = vpack.c.b16 %v333, %v329
    %v382 = vpack.c.b16 %v334, %v330
    %v383 = vpack.c.b16 %v335, %v331
    %v384 = vpack.c.b16 %v336, %v332
    %v385 = vpack.c.b16 %v341, %v337
    %v386 = vpack.c.b16 %v342, %v338
    %v387 = vpack.c.b16 %v343, %v339
    %v388 = vpack.c.b16 %v344, %v340
    %v389 = vpack.c.b16 %v349, %v345
    %v390 = vpack.c.b16 %v350, %v346
    %v391 = vpack.c.b16 %v351, %v347
    %v392 = vpack.c.b16 %v352, %v348
    %v393 = vpack.c.b16 %v357, %v353
    %v394 = vpack.c.b16 %v358, %v354
    %v395 = vpack.c.b16 %v359, %v355
    %v396 = vpack.c.b16 %v360, %v356
    %v397 = vpack.c.b16 %v365, %v361
    %v398 = vpack.c.b16 %v366, %v362
    %v399 = vpack.c.b16 %v367, %v363
    %v400 = vpack.c.b16 %v368, %v364
    %433 = vmatpush.bf16.msra.mxu0 %v397
    %434 = vmatpush.bf16.msra.mxu0 %v393
    %435 = vmatpush.bf16.msra.mxu0 %v389
    %436 = vmatpush.bf16.msra.mxu0 %v385
    %437 = vmatpush.bf16.msra.mxu0 %v381
    %438 = vmatpush.bf16.msra.mxu0 %v377
    %439 = vmatpush.bf16.msra.mxu0 %v373
    %440 = vmatpush.bf16.msra.mxu0 %v369
    %441 = vmatmul.bf16.gmra.mxu0 %v271
    %v442 = vpop.f32.mrf.mxu0
    %v443 = vadd.f32 0.0, %v442
    %v444 = vpop.f32.mrf.mxu0
    %445 = vdwg.mxu0
    %446 = vmatpush.bf16.msra.mxu0 %v398
    %447 = vmatpush.bf16.msra.mxu0 %v394
    %448 = vmatpush.bf16.msra.mxu0 %v390
    %449 = vmatpush.bf16.msra.mxu0 %v386
    %450 = vmatpush.bf16.msra.mxu0 %v382
    %451 = vmatpush.bf16.msra.mxu0 %v378
    %452 = vmatpush.bf16.msra.mxu0 %v374
    %453 = vmatpush.bf16.msra.mxu0 %v370
    %454 = vmatmul.bf16.gmra.mxu0 %v271
    %v455 = vpop.f32.mrf.mxu0
    %v456 = vadd.f32 0.0, %v455
    %v457 = vpop.f32.mrf.mxu0
    %458 = vdwg.mxu0
    %459 = vmatpush.bf16.msra.mxu0 %v399
    %460 = vmatpush.bf16.msra.mxu0 %v395
    %461 = vmatpush.bf16.msra.mxu0 %v391
    %462 = vmatpush.bf16.msra.mxu0 %v387
    %463 = vmatpush.bf16.msra.mxu0 %v383
    %464 = vmatpush.bf16.msra.mxu0 %v379
    %465 = vmatpush.bf16.msra.mxu0 %v375
    %466 = vmatpush.bf16.msra.mxu0 %v371
    %467 = vmatmul.bf16.gmra.mxu0 %v271
    %v468 = vpop.f32.mrf.mxu0
    %v469 = vadd.f32 0.0, %v468
    %v470 = vpop.f32.mrf.mxu0
    %471 = vdwg.mxu0
    %472 = vmatpush.bf16.msra.mxu0 %v400
    %473 = vmatpush.bf16.msra.mxu0 %v396
    %474 = vmatpush.bf16.msra.mxu0 %v392
    %475 = vmatpush.bf16.msra.mxu0 %v388
    %476 = vmatpush.bf16.msra.mxu0 %v384
    %477 = vmatpush.bf16.msra.mxu0 %v380
    %478 = vmatpush.bf16.msra.mxu0 %v376
    %479 = vmatpush.bf16.msra.mxu0 %v372
    %480 = vmatmul.bf16.gmra.mxu0 %v271
    %v481 = vpop.f32.mrf.mxu0
    %v482 = vadd.f32 0.0, %v481
    %v483 = vpop.f32.mrf.mxu0
    %484 = vdwg.mxu0
    %v485 = vadd.f32 %v168, %v443
    %v486 = vadd.f32 %v185, %v456
    %v487 = vadd.f32 %v203, %v469
    %v488 = vadd.f32 %v221, %v482
    %v489 = vmul.f32 %v485, 0.5
    %v490 = vtanh.pop %v489
    %v491 = vmul.f32 %v490, 0.5
    %v492 = vadd.f32 %v491, 0.5
    %v493 = vmul.f32 %v486, 0.5
    %v494 = vtanh.pop %v493
    %v495 = vmul.f32 %v494, 0.5
    %v496 = vadd.f32 %v495, 0.5
    %v497 = vtanh.pop %v487
    %v498 = vmul.f32 %v488, 0.5
    %v499 = vtanh.pop %v498
    %v500 = vmul.f32 %v499, 0.5
    %v501 = vadd.f32 %v500, 0.5
    %v502 = vmul.f32 %v492, %v497
    %v503 = vmul.f32 %v496, %v268
    %v504 = vadd.f32 %v503, %v502
    %v505 = vtanh.pop %v504
    %v506 = vmul.f32 %v501, %v505
    %v507 = vpack.c.bf16 %v506, %v506
    %s508 = scalar_lea.vmem [#allocation10], 4
    %509 = vst [vmem:[%s508] sm:$0xf] %v507
    %510 = vmatpush.bf16.msra.mxu0 %v397
    %511 = vmatpush.bf16.msra.mxu0 %v393
    %512 = vmatpush.bf16.msra.mxu0 %v389
    %513 = vmatpush.bf16.msra.mxu0 %v385
    %514 = vmatpush.bf16.msra.mxu0 %v381
    %515 = vmatpush.bf16.msra.mxu0 %v377
    %516 = vmatpush.bf16.msra.mxu0 %v373
    %517 = vmatpush.bf16.msra.mxu0 %v369
    %518 = vmatmul.bf16.gmra.mxu0 %v507
    %v519 = vpop.f32.mrf.mxu0
    %v520 = vadd.f32 0.0, %v519
    %v521 = vpop.f32.mrf.mxu0
    %522 = vdwg.mxu0
    %523 = vmatpush.bf16.msra.mxu0 %v398
    %524 = vmatpush.bf16.msra.mxu0 %v394
    %525 = vmatpush.bf16.msra.mxu0 %v390
    %526 = vmatpush.bf16.msra.mxu0 %v386
    %527 = vmatpush.bf16.msra.mxu0 %v382
    %528 = vmatpush.bf16.msra.mxu0 %v378
    %529 = vmatpush.bf16.msra.mxu0 %v374
    %530 = vmatpush.bf16.msra.mxu0 %v370
    %531 = vmatmul.bf16.gmra.mxu0 %v507
    %v532 = vpop.f32.mrf.mxu0
    %v533 = vadd.f32 0.0, %v532
    %v534 = vpop.f32.mrf.mxu0
    %535 = vdwg.mxu0
    %536 = vmatpush.bf16.msra.mxu0 %v399
    %537 = vmatpush.bf16.msra.mxu0 %v395
    %538 = vmatpush.bf16.msra.mxu0 %v391
    %539 = vmatpush.bf16.msra.mxu0 %v387
    %540 = vmatpush.bf16.msra.mxu0 %v383
    %541 = vmatpush.bf16.msra.mxu0 %v379
    %542 = vmatpush.bf16.msra.mxu0 %v375
    %543 = vmatpush.bf16.msra.mxu0 %v371
    %544 = vmatmul.bf16.gmra.mxu0 %v507
    %v545 = vpop.f32.mrf.mxu0
    %v546 = vadd.f32 0.0, %v545
    %v547 = vpop.f32.mrf.mxu0
    %548 = vdwg.mxu0
    %549 = vmatpush.bf16.msra.mxu0 %v400
    %550 = vmatpush.bf16.msra.mxu0 %v396
    %551 = vmatpush.bf16.msra.mxu0 %v392
    %552 = vmatpush.bf16.msra.mxu0 %v388
    %553 = vmatpush.bf16.msra.mxu0 %v384
    %554 = vmatpush.bf16.msra.mxu0 %v380
    %555 = vmatpush.bf16.msra.mxu0 %v376
    %556 = vmatpush.bf16.msra.mxu0 %v372
    %557 = vmatmul.bf16.gmra.mxu0 %v507
    %v558 = vpop.f32.mrf.mxu0
    %v559 = vadd.f32 0.0, %v558
    %v560 = vpop.f32.mrf.mxu0
    %561 = vdwg.mxu0
    %v562 = vadd.f32 %v171, %v520
    %v563 = vadd.f32 %v188, %v533
    %v564 = vadd.f32 %v206, %v546
    %v565 = vadd.f32 %v224, %v559
    %v566 = vmul.f32 %v562, 0.5
    %v567 = vtanh.pop %v566
    %v568 = vmul.f32 %v567, 0.5
    %v569 = vadd.f32 %v568, 0.5
    %v570 = vmul.f32 %v563, 0.5
    %v571 = vtanh.pop %v570
    %v572 = vmul.f32 %v571, 0.5
    %v573 = vadd.f32 %v572, 0.5
    %v574 = vtanh.pop %v564
    %v575 = vmul.f32 %v565, 0.5
    %v576 = vtanh.pop %v575
    %v577 = vmul.f32 %v576, 0.5
    %v578 = vadd.f32 %v577, 0.5
    %v579 = vmul.f32 %v569, %v574
    %v580 = vmul.f32 %v573, %v504
    %v581 = vadd.f32 %v580, %v579
    %v582 = vtanh.pop %v581
    %v583 = vmul.f32 %v578, %v582
    %v584 = vpack.c.bf16 %v583, %v583
    %s585 = scalar_lea.vmem [#allocation10], 8
    %586 = vst [vmem:[%s585] sm:$0xf] %v584
    // Predicated region
    $region34: #{tpu_custom_call.1} parent=1 // pred_check
      _
    $region35: #{tpu_custom_call.1} parent=1 // pred_check_branch
      %588 = sbr.rel (0) target = $region37
    $region36: #{tpu_custom_call.1} parent=1 // pred_region
      %590 = vsyncadd [#allocation4], 0
      %s591 = sshll.u32 [#allocation10], 4
      %s592 = int_to_ptr.vmem [resolvable:$true] %s591
      %s593 = sshll.u32 %s4, 4
      %s594 = int_to_ptr.hbm [resolvable:$true] %s593
      %599 = dma.vmem_to_hbm [thread:$0]  %s592, 192, %s594, [#allocation4], 64, 64, 4
    $region37: #{tpu_custom_call.1} parent=1 // pred_fallthru
      _
    // Predicated region
    $region38: #{tpu_custom_call.1} parent=1 // pred_check
      _
    $region39: #{tpu_custom_call.1} parent=1 // pred_check_branch
      %601 = sbr.rel (0) target = $region41
    $region40: #{tpu_custom_call.1} parent=1 // pred_region
      %603 = dma.done [#allocation4], 192
    $region41: #{tpu_custom_call.1} parent=1 // pred_fallthru
      _
    %604 = vsyncpa [#allocation3], 1
    %605 = vsyncpa [#allocation6], 1
    %606 = vsyncpa [#allocation9], 1
    %607 = vsyncpa [#allocation4], 1

</llo_original>
